<compile_context>
chip_gen: v7x
topology: tpu7x:2x2x1
jax: 0.10.0
libtpu: 0.0.40
codegen_flags: <defaults>
</compile_context>

<pallas_src>
import jax
import jax.numpy as jnp
from jax import lax
from jax.experimental import pallas as pl
from jax.experimental.pallas import tpu as pltpu

INPUT_SIZE = 9
OUTPUT_SIZE = 5

# 16384 rows: x block (16384, 9) f32 lane-pads to ~8 MiB in VMEM, output block
# (5, 16384) ~0.5 MiB; double-buffered total ~17 MiB, under the 32 MiB limit
# below on every generation (v5e/v6e physical 128 MiB, v7x physical 64 MiB).
_MAX_TILE_ROWS = 16384
_VMEM_LIMIT_BYTES = 32 * 1024 * 1024


def _round_up(n: int, m: int) -> int:
    return ((n + m - 1) // m) * m


def _choose_tile_rows(batch: int, max_tile_rows: int) -> int:
    """Pick the batch tile: full-extent for small B, else a 128-aligned tile
    sized so the grid has >= 2 steps (feeds both v7x TensorCores), capped."""
    if batch <= 256:
        # Single full-extent block: block dims equal to the array dims satisfy
        # the (8, 128) tiling rule regardless of divisibility.
        return batch
    tm = _round_up(-(-batch // 2), 128)  # >= ceil(B/2), multiple of 128
    return min(tm, max_tile_rows)


def linear_kernel(x_ref, w_ref, b_ref, o_ref):
    # x: (tm, in)   w: (out, in)   b: (out, 1)   o: (out, tm)   [y^T layout]
    x = x_ref[...]
    w = w_ref[...]
    b = b_ref[...]
    # Contract the shared `in` axis (last of both): (out, in) x (tm, in) -> (out, tm).
    # This consumes the PyTorch-layout weight directly and produces a
    # lane-dense (batch-on-lanes) output block.
    acc = lax.dot_general(
        w,
        x,
        dimension_numbers=(((1,), (1,)), ((), ())),
        preferred_element_type=jnp.float32,
    )
    o_ref[...] = (acc + b).astype(o_ref.dtype)


def small_model_forward(x, weight, bias, *, max_tile_rows=_MAX_TILE_ROWS):
    """Forward of SmallModel: y = x @ weight.T + bias.

    x:      (B, INPUT_SIZE)            float32
    weight: (OUTPUT_SIZE, INPUT_SIZE)  (PyTorch Linear layout)
    bias:   (OUTPUT_SIZE,)
    returns (B, OUTPUT_SIZE)
    """
    B = x.shape[0]
    bias2d = bias.reshape(OUTPUT_SIZE, 1)

    tm = _choose_tile_rows(B, max_tile_rows)
    grid = (pl.cdiv(B, tm),)  # ragged final block masked by Pallas — no pad/slice

    itemsize = jnp.dtype(x.dtype).itemsize
    cost = pl.CostEstimate(
        flops=2 * B * INPUT_SIZE * OUTPUT_SIZE,
        transcendentals=0,
        bytes_accessed=(B * (INPUT_SIZE + OUTPUT_SIZE)
                        + OUTPUT_SIZE * INPUT_SIZE + OUTPUT_SIZE) * itemsize,
    )

    out_t = pl.pallas_call(
        linear_kernel,
        out_shape=jax.ShapeDtypeStruct((OUTPUT_SIZE, B), x.dtype),
        grid=grid,
        in_specs=[
            # x: tiled over batch rows.
            pl.BlockSpec((tm, INPUT_SIZE), lambda i: (i, 0)),
            # weight / bias: same block every step -> resident in VMEM.
            pl.BlockSpec((OUTPUT_SIZE, INPUT_SIZE), lambda i: (0, 0)),
            pl.BlockSpec((OUTPUT_SIZE, 1), lambda i: (0, 0)),
        ],
        # Lane-dense y^T output: batch on the 128-lane axis.
        out_specs=pl.BlockSpec((OUTPUT_SIZE, tm), lambda i: (0, i)),
        compiler_params=pltpu.CompilerParams(
            dimension_semantics=("parallel",),
            vmem_limit_bytes=_VMEM_LIMIT_BYTES,
        ),
        cost_estimate=cost,
    )(x, weight, bias2d)

    # Module contract is (B, OUTPUT_SIZE); one transpose in XLA at the end.
    # Callers that can consume feature-major (OUTPUT_SIZE, B) should take
    # `out_t` directly and skip this pass.
    return out_t.T


if __name__ == "__main__":
    key = jax.random.PRNGKey(0)
    kx, kw, kb = jax.random.split(key, 3)

    batch = 8
    x = jax.random.normal(kx, (batch, INPUT_SIZE), dtype=jnp.float32)

    # Deterministic parameter init mirroring PyTorch's default Linear init:
    # U(-1/sqrt(in_features), 1/sqrt(in_features)).
    bound = 1.0 / (INPUT_SIZE ** 0.5)
    weight = jax.random.uniform(
        kw, (OUTPUT_SIZE, INPUT_SIZE), dtype=jnp.float32, minval=-bound, maxval=bound
    )
    bias = jax.random.uniform(
        kb, (OUTPUT_SIZE,), dtype=jnp.float32, minval=-bound, maxval=bound
    )

    # Small-batch path (single full-extent block).
    out = jax.block_until_ready(small_model_forward(x, weight, bias))
    ref = x @ weight.T + bias
    assert out.shape == (batch, OUTPUT_SIZE)
    assert jnp.allclose(out, ref, atol=1e-5, rtol=1e-5)

    # Multi-tile + ragged-final-block path (grid of 2, last block masked).
    batch2 = 300
    x2 = jax.random.normal(kx, (batch2, INPUT_SIZE), dtype=jnp.float32)
    out2 = jax.block_until_ready(small_model_forward(x2, weight, bias))
    ref2 = x2 @ weight.T + bias
    assert out2.shape == (batch2, OUTPUT_SIZE)
    assert jnp.allclose(out2, ref2, atol=1e-5, rtol=1e-5)

    print("KERNEL_OK")
</pallas_src>

<mosaic_0001>
module attributes {stable_mosaic.version = 11 : i64} {
  func.func @linear_kernel(%arg0: i32, %arg1: memref<8x9xf32, #tpu.memory_space<vmem>>, %arg2: memref<5x9xf32, #tpu.memory_space<vmem>>, %arg3: memref<5x1xf32, #tpu.memory_space<vmem>>, %arg4: memref<5x8xf32, #tpu.memory_space<vmem>>) attributes {dimension_semantics = [#tpu.dimension_semantics<parallel>], iteration_bounds = array<i64: 1>, scalar_prefetch = 0 : i64, scratch_operands = 0 : i64, tpu.core_type = #tpu.core_type<tc>, window_params = [{transform_indices = @transform_0, window_bounds = array<i64: 8, 9>}, {pipeline_mode = #tpu.pipeline_mode<synchronous>, transform_indices = @transform_1, window_bounds = array<i64: 5, 9>}, {pipeline_mode = #tpu.pipeline_mode<synchronous>, transform_indices = @transform_2, window_bounds = array<i64: 5, 1>}, {transform_indices = @transform_3, window_bounds = array<i64: 5, 8>}]} {
    %c0 = arith.constant 0 : index
    %c0_0 = arith.constant 0 : index
    %0 = vector.load %arg1[%c0, %c0_0] : memref<8x9xf32, #tpu.memory_space<vmem>>, vector<8x9xf32>
    %c0_1 = arith.constant 0 : index
    %c0_2 = arith.constant 0 : index
    %1 = vector.load %arg2[%c0_1, %c0_2] : memref<5x9xf32, #tpu.memory_space<vmem>>, vector<5x9xf32>
    %c0_3 = arith.constant 0 : index
    %c0_4 = arith.constant 0 : index
    %2 = vector.load %arg3[%c0_3, %c0_4] : memref<5x1xf32, #tpu.memory_space<vmem>>, vector<5x1xf32>
    %cst = arith.constant dense<0.000000e+00> : vector<5x8xf32>
    %3 = tpu.matmul %1, %0, %cst {dimension_numbers = #tpu.dot_dimension_numbers<[1], [1], [0], [0], [0, 0, 1, 0], [], []>} : vector<5x9xf32>, vector<8x9xf32>, vector<5x8xf32> -> vector<5x8xf32>
    %4 = vector.broadcast %2 : vector<5x1xf32> to vector<5x8xf32>
    %5 = arith.addf %3, %4 : vector<5x8xf32>
    %c0_5 = arith.constant 0 : index
    %c0_6 = arith.constant 0 : index
    %6 = vector.load %arg4[%c0_5, %c0_6] : memref<5x8xf32, #tpu.memory_space<vmem>>, vector<5x8xf32>
    tpu.vector_store %arg4[%c0_5, %c0_6], %5 {strides = array<i32>} : memref<5x8xf32, #tpu.memory_space<vmem>>, vector<5x8xf32>,
    return
  }
  func.func @transform_0(%arg0: i32) -> (i32, i32) {
    %c0_i32 = arith.constant 0 : i32
    %c0_i32_0 = arith.constant 0 : i32
    return %arg0, %c0_i32 : i32, i32
  }
  func.func @transform_1(%arg0: i32) -> (i32, i32) {
    %c0_i32 = arith.constant 0 : i32
    %c0_i32_0 = arith.constant 0 : i32
    %c0_i32_1 = arith.constant 0 : i32
    return %c0_i32, %c0_i32_0 : i32, i32
  }
  func.func @transform_2(%arg0: i32) -> (i32, i32) {
    %c0_i32 = arith.constant 0 : i32
    %c0_i32_0 = arith.constant 0 : i32
    %c0_i32_1 = arith.constant 0 : i32
    return %c0_i32, %c0_i32_0 : i32, i32
  }
  func.func @transform_3(%arg0: i32) -> (i32, i32) {
    %c0_i32 = arith.constant 0 : i32
    %c0_i32_0 = arith.constant 0 : i32
    return %c0_i32, %arg0 : i32, i32
  }
}

</mosaic_0001>

<llo_original>
// kernel: tpu_custom_call.1
$region0: #{tpu_custom_call.1}
  #allocation0 [shape = 'u32[]', space=smem, size = 0x4, offset = 0x4, fixed_abs, tag = 'smem constant byte address 0x4 - core index']
  #allocation1 [shape = 'u32[144,128]{1,0:T(1,128)}', space=vmem, size = 0x12000, scoped, tag = 'internal scratch']
  %s0 = inlined_call_operand.vmem [shape: f32[8,9], index: 0, kind: input, shape index: {}]
  %s1 = inlined_call_operand.hbm [shape: f32[5,9], index: 1, kind: input, shape index: {}]
  %s2 = inlined_call_operand.vmem [shape: f32[5,1], index: 2, kind: input, shape index: {}]
  %s3 = inlined_call_operand.hbm [shape: f32[5,8], index: 3, kind: output, shape index: {}]
  %s4 = sld [smem:[#allocation0]]
  $region26: #{tpu_custom_call.1} parent=0
    _
  %s6 = ssub.s32 1, %s4
  %s7 = scalar_select 0, %s6, %s4
  $region1: #{tpu_custom_call.1} parent=0
    #allocation2 [shape = 'u8[4096]{0}', space=vmem, size = 0x1000, scoped, tag = 'input window, operand 1, single buffered']
    #allocation3 [shape = 's32[1]{0}', space=sflag, size = 0x4, scoped, tag = 'scoped memory for tpu_custom_call.1']
    #allocation4 [shape = 's32[1]{0}', space=sflag, size = 0x4, scoped, tag = 'scoped memory for tpu_custom_call.1']
    #allocation5 [shape = 'u8[4096]{0}', space=vmem, size = 0x1000, scoped, tag = 'output window, operand 0, single buffered']
    %8 = vsyncpa [#allocation3], 0
    %9 = vsyncpa [#allocation4], 0
    // Predicated region
    $region2: #{tpu_custom_call.1} parent=1 // pred_check
      _
    $region3: #{tpu_custom_call.1} parent=1 // pred_check_branch
      %11 = sbr.rel (0) target = $region5
    $region4: #{tpu_custom_call.1} parent=1 // pred_region
      _
    $region5: #{tpu_custom_call.1} parent=1 // pred_fallthru
      _
    // Predicated region
    $region6: #{tpu_custom_call.1} parent=1 // pred_check
      _
    $region7: #{tpu_custom_call.1} parent=1 // pred_check_branch
      %13 = sbr.rel (0) target = $region9
    $region8: #{tpu_custom_call.1} parent=1 // pred_region
      %s15 = ssub.s32 128, 128
      %16 = vsyncadd [#allocation3], %s15
      %s18 = sshll.u32 [#allocation2], 4
      %s19 = int_to_ptr.vmem [resolvable:$true] %s18
      %21 = dma.hbm_to_vmem [thread:$0]  %s1, 128, %s19, [#allocation3]
    $region9: #{tpu_custom_call.1} parent=1 // pred_fallthru
      _
    // Predicated region
    $region10: #{tpu_custom_call.1} parent=1 // pred_check
      _
    $region11: #{tpu_custom_call.1} parent=1 // pred_check_branch
      %23 = sbr.rel (0) target = $region13
    $region12: #{tpu_custom_call.1} parent=1 // pred_region
      _
    $region13: #{tpu_custom_call.1} parent=1 // pred_fallthru
      _
    // Predicated region
    $region14: #{tpu_custom_call.1} parent=1 // pred_check
      _
    $region15: #{tpu_custom_call.1} parent=1 // pred_check_branch
      %25 = sbr.rel (0) target = $region17
    $region16: #{tpu_custom_call.1} parent=1 // pred_region
      %26 = dma.done [#allocation3], 128
    $region17: #{tpu_custom_call.1} parent=1 // pred_fallthru
      _
    %v27 = vld [vmem:[%s0] sm:$0xff]
    %v28 = vld [vmem:[#allocation2] sm:$0x1f]
    %v29 = vld [vmem:[%s2] sm:$0x1f]
    %31 = vset.pattern.permute.xlu0 0
    %32 = vperm.xlu0 %31, %v29
    %v33 = vpop.permute.xlu0 %32
    %vm35 = vcmask 72704
    %v37 = vsel %vm35, %v28, 0
    %v40 = vsel %vm35, %v27, 0
    %42 = vmatprep.subr.mxu0 0.0
    %43 = vmatpush1.xpose.msra.mxu0 %v40
    %44 = vmatprep.subr.mxu0 0.0
    %45 = vmatpush1.xpose.msra.mxu0 0.0
    %46 = vmatprep.subr.mxu0 0.0
    %47 = vmatpush1.xpose.msra.mxu0 0.0
    %48 = vmatprep.subr.mxu0 0.0
    %49 = vmatpush1.xpose.msra.mxu0 0.0
    %50 = vmatprep.subr.mxu0 0.0
    %51 = vmatpush1.xpose.msra.mxu0 0.0
    %52 = vmatprep.subr.mxu0 0.0
    %53 = vmatpush1.xpose.msra.mxu0 0.0
    %54 = vmatprep.subr.mxu0 0.0
    %55 = vmatpush1.xpose.msra.mxu0 0.0
    %56 = vmatprep.subr.mxu0 0.0
    %57 = vmatpush1.xpose.msra.mxu0 0.0
    %58 = vmatprep.subr.mxu0 0.0
    %59 = vmatpush1.xpose.msra.mxu0 0.0
    %60 = vmatprep.subr.mxu0 0.0
    %61 = vmatpush1.xpose.msra.mxu0 0.0
    %62 = vmatprep.subr.mxu0 0.0
    %63 = vmatpush1.xpose.msra.mxu0 0.0
    %64 = vmatprep.subr.mxu0 0.0
    %65 = vmatpush1.xpose.msra.mxu0 0.0
    %66 = vmatprep.subr.mxu0 0.0
    %67 = vmatpush1.xpose.msra.mxu0 0.0
    %68 = vmatprep.subr.mxu0 0.0
    %69 = vmatpush1.xpose.msra.mxu0 0.0
    %70 = vmatprep.subr.mxu0 0.0
    %71 = vmatpush1.xpose.msra.mxu0 0.0
    %72 = vmatprep.subr.mxu0 0.0
    %73 = vmatpush1.xpose.msra.mxu0 0.0
    %74 = vmatprep.subr.mxu0 0.0
    %75 = vmatpush1.xpose.msra.mxu0 0.0
    %76 = vmatprep.subr.mxu0 0.0
    %77 = vmatpush1.xpose.msra.mxu0 0.0
    %78 = vmatprep.subr.mxu0 0.0
    %79 = vmatpush1.xpose.msra.mxu0 0.0
    %80 = vmatprep.subr.mxu0 0.0
    %81 = vmatpush1.xpose.msra.mxu0 0.0
    %82 = vmatprep.subr.mxu0 0.0
    %83 = vmatpush1.xpose.msra.mxu0 0.0
    %84 = vmatprep.subr.mxu0 0.0
    %85 = vmatpush1.xpose.msra.mxu0 0.0
    %86 = vmatprep.subr.mxu0 0.0
    %87 = vmatpush1.xpose.msra.mxu0 0.0
    %88 = vmatprep.subr.mxu0 0.0
    %89 = vmatpush1.xpose.msra.mxu0 0.0
    %90 = vmatprep.subr.mxu0 0.0
    %91 = vmatpush1.xpose.msra.mxu0 0.0
    %92 = vmatprep.subr.mxu0 0.0
    %93 = vmatpush1.xpose.msra.mxu0 0.0
    %94 = vmatprep.subr.mxu0 0.0
    %95 = vmatpush1.xpose.msra.mxu0 0.0
    %96 = vmatprep.subr.mxu0 0.0
    %97 = vmatpush1.xpose.msra.mxu0 0.0
    %98 = vmatprep.subr.mxu0 0.0
    %99 = vmatpush1.xpose.msra.mxu0 0.0
    %100 = vmatprep.subr.mxu0 0.0
    %101 = vmatpush1.xpose.msra.mxu0 0.0
    %102 = vmatprep.subr.mxu0 0.0
    %103 = vmatpush1.xpose.msra.mxu0 0.0
    %104 = vmatprep.subr.mxu0 0.0
    %105 = vmatpush1.xpose.msra.mxu0 0.0
    %106 = vmatprep.mubr.f32.mxu0 0.0
    %107 = vmatmul.mubr.f32.gmra.mrb[0].mxu0 %v37
    %v108 = vpop.f32.mrb[0].mxu0
    %v109 = vadd.f32 %v33, %v108
    %v110 = vpop.f32.mrb[0].mxu0
    %111 = vdwg.mxu0
    %vm112 = vcmask 61440
    %113 = vst.msk [vmem:[#allocation5] sm:$0x1f] %vm112, %v109
    // Predicated region
    $region18: #{tpu_custom_call.1} parent=1 // pred_check
      _
    $region19: #{tpu_custom_call.1} parent=1 // pred_check_branch
      %115 = sbr.rel (0) target = $region21
    $region20: #{tpu_custom_call.1} parent=1 // pred_region
      %s117 = ssub.s32 128, 128
      %118 = vsyncadd [#allocation4], %s117
      %s120 = sshll.u32 [#allocation5], 4
      %s121 = int_to_ptr.vmem [resolvable:$true] %s120
      %123 = dma.vmem_to_hbm [thread:$0]  %s121, 128, %s3, [#allocation4]
    $region21: #{tpu_custom_call.1} parent=1 // pred_fallthru
      _
    // Predicated region
    $region22: #{tpu_custom_call.1} parent=1 // pred_check
      _
    $region23: #{tpu_custom_call.1} parent=1 // pred_check_branch
      %125 = sbr.rel (0) target = $region25
    $region24: #{tpu_custom_call.1} parent=1 // pred_region
      %126 = dma.done [#allocation4], 128
    $region25: #{tpu_custom_call.1} parent=1 // pred_fallthru
      _
    %127 = vsyncpa [#allocation3], 1
    %128 = vsyncpa [#allocation4], 1

</llo_original>
